<compile_context>
chip_gen: v7x
topology: tpu7x:2x2x1
jax: 0.10.0
libtpu: 0.0.40
codegen_flags: <defaults>
</compile_context>

<pallas_src>
import numpy as np
import jax
import jax.numpy as jnp
from jax.experimental import pallas as pl
from jax.experimental.pallas import tpu as pltpu

OUT_CHANNELS = 40
OUT_PAD = 128            # lane-dense output width (extra columns are zero)
SAMPLE_RATE = 16000
MIN_LOW_HZ = 50
MIN_BAND_HZ = 50
N_FFT = 160
HOP = 160
N_BINS = N_FFT // 2 + 1  # 81 (onesided STFT)

MAX_TILE_R = 2048        # ~3 MiB double-buffered in bf16 -> fits every generation
SPLIT_ROWS = 512         # only force >=2 grid steps (v7x two-TC) above this many rows
IO_DTYPE = jnp.bfloat16  # HBM dtype for frames / basis / kernel output


def to_mel(hz):
    return 2595 * np.log10(1 + hz / 700)


def to_hz(mel):
    return 700 * (10 ** (mel / 2595) - 1)


def init_params():
    """Deterministic parameter init, mirroring SincConvFFT.__init__."""
    low_hz = MIN_LOW_HZ
    high_hz = SAMPLE_RATE / 2 - (MIN_BAND_HZ + MIN_LOW_HZ)
    mel = np.linspace(to_mel(low_hz), to_mel(high_hz), OUT_CHANNELS + 1)
    hz = to_hz(mel)
    low_freq = hz[:-1].reshape(-1, 1).astype(np.float32)       # (40, 1)
    band_freq = np.diff(hz).reshape(-1, 1).astype(np.float32)  # (40, 1)
    return jnp.asarray(low_freq), jnp.asarray(band_freq)


def _round_up(x, m):
    return ((x + m - 1) // m) * m


def _choose_tile_rows(total_rows):
    # Rows are the second-to-last block dim; keep a multiple of 16 so bf16
    # (16, 128) sublane packing is always native.
    rows = _round_up(max(total_rows, 16), 16)
    if rows <= SPLIT_ROWS:
        # Small inputs: one grid step (no forced 2-way split on single-TC v5e/v6e).
        return rows
    # Large inputs: an even number (>=2) of balanced steps so both v7x
    # TensorCores get work under dimension_semantics=("parallel",).
    n_tiles = max(2, -(-rows // MAX_TILE_R))
    n_tiles = _round_up(n_tiles, 2)
    return _round_up(-(-rows // n_tiles), 16)


def _sinc_fft_kernel(frames_ref, basis_ref, feat_ref):
    # frames_ref: (tile_r, N_FFT)   bf16 frames (rows = flattened B*n_frames)
    # basis_ref:  (N_FFT, OUT_PAD)  bf16 fused cos-DFT x band-summation basis
    # feat_ref:   (tile_r, OUT_PAD) bf16 lane-dense output tile
    feat_ref[...] = jnp.dot(
        frames_ref[...], basis_ref[...], preferred_element_type=jnp.float32
    ).astype(feat_ref.dtype)


def sinc_conv_fft(x, low_freq, band_freq):
    """x: (B, 1, T) float32, T must be a multiple of HOP (matches stft framing)."""
    B, _, T = x.shape
    assert T % HOP == 0, "framing-by-reshape requires T % hop == 0"
    n_frames = 1 + T // HOP

    # torch.stft(center=True) reflect-pads by n_fft//2 on each side; hop == n_fft
    # means the padded signal splits into non-overlapping frames.
    pad = N_FFT // 2
    xp = jnp.pad(x[:, 0, :], ((0, 0), (pad, pad)), mode="reflect")
    frames = xp.reshape(B * n_frames, N_FFT).astype(IO_DTYPE)
    # TODO(synk): for very long signals, read x directly in-kernel
    # (memory_space=pl.ANY + manual frame DMA with reflect fix-up) to avoid any
    # framed copy; here allow_input_fusion lets XLA fuse this producer instead.

    # Real-part rectangular-window DFT basis (numpy constant).
    n = np.arange(N_FFT)
    k = np.arange(N_BINS)
    cos_basis = np.cos(2.0 * np.pi * np.outer(n, k) / N_FFT).astype(np.float32)  # (160, 81)

    # Band-summation matrix: band_mat[c, k] = 1 iff f_low_idx[c] <= k < f_high_idx[c]
    # (mirrors spectrogram[:, low:high, :].sum(1)).
    # NOTE: band_width uses 2*N_BINS (= spectrogram.shape[1]) exactly as the reference.
    # TODO(synk): floor/ceil in f32 could differ by one bin from torch's int()
    # slicing for frequencies exactly on a bin edge; unit-test against torch.
    f_low = jnp.abs(low_freq) + MIN_LOW_HZ                                        # (40, 1)
    f_high = jnp.clip(f_low + MIN_BAND_HZ + jnp.abs(band_freq),
                      MIN_LOW_HZ, SAMPLE_RATE / 2)                                # (40, 1)
    band_width = SAMPLE_RATE / (2 * N_BINS)
    f_low_idx = jnp.floor(f_low / band_width).astype(jnp.int32)
    f_high_idx = jnp.ceil(f_high / band_width).astype(jnp.int32)
    bins = jnp.arange(N_BINS)[None, :]                                            # (1, 81)
    band_mat = ((bins >= f_low_idx) & (bins < f_high_idx)).astype(jnp.float32)    # (40, 81)

    # Fuse the two linear maps into one (160, 128) basis; K stays 160 (no MXU
    # padding to 256 -- the kernel is HBM-bound, padding K only adds DMA bytes).
    combined = jnp.asarray(cos_basis) @ band_mat.T                                # (160, 40)
    combined = jnp.pad(combined, ((0, 0), (0, OUT_PAD - OUT_CHANNELS)))           # (160, 128)
    combined = combined.astype(IO_DTYPE)

    # Row tiling over the flattened (B * n_frames) axis.
    total_rows = B * n_frames
    tile_r = _choose_tile_rows(total_rows)
    padded_rows = _round_up(total_rows, tile_r)
    if padded_rows != total_rows:
        frames = jnp.pad(frames, ((0, padded_rows - total_rows), (0, 0)))
    grid = (padded_rows // tile_r,)

    bytes_el = jnp.dtype(IO_DTYPE).itemsize
    cost = pl.CostEstimate(
        flops=2 * padded_rows * N_FFT * OUT_PAD,
        transcendentals=0,
        bytes_accessed=(padded_rows * N_FFT
                        + padded_rows * OUT_PAD
                        + N_FFT * OUT_PAD) * bytes_el,
    )

    feat_pad = pl.pallas_call(
        _sinc_fft_kernel,
        out_shape=jax.ShapeDtypeStruct((padded_rows, OUT_PAD), IO_DTYPE),
        grid=grid,
        in_specs=[
            pl.BlockSpec((tile_r, N_FFT), lambda r: (r, 0)),
            pl.BlockSpec((N_FFT, OUT_PAD), lambda r: (0, 0)),
        ],
        out_specs=pl.BlockSpec((tile_r, OUT_PAD), lambda r: (r, 0)),
        compiler_params=pltpu.CompilerParams(
            dimension_semantics=("parallel",),
            vmem_limit_bytes=8 * 1024 * 1024,      # ~3 MiB actual footprint
            allow_input_fusion=[True, False],      # fuse pad/reshape/cast into input
        ),
        cost_estimate=cost,
    )(frames, combined)

    # Slice away row/lane padding, restore (B, out_channels, n_frames) layout and
    # the reference's signed global-max normalization (no epsilon, as in torch).
    feat = feat_pad[:total_rows, :OUT_CHANNELS].astype(jnp.float32)
    feat = feat.reshape(B, n_frames, OUT_CHANNELS)
    feat = jnp.transpose(feat, (0, 2, 1))
    return feat / jnp.max(feat)


if __name__ == "__main__":
    key = jax.random.PRNGKey(0)
    # Small input consistent with the module: (batch=2, channels=1, samples=1280)
    # -> 9 STFT frames of 81 bins -> 40 sinc-band features.
    x = jax.random.normal(key, (2, 1, 1280), dtype=jnp.float32)
    low_freq, band_freq = init_params()

    out = jax.jit(sinc_conv_fft)(x, low_freq, band_freq)
    out = jax.block_until_ready(out)

    assert out.shape == (2, OUT_CHANNELS, 1 + 1280 // HOP)
    assert out.dtype == jnp.float32
    assert bool(jnp.all(jnp.isfinite(out)))
    print("KERNEL_OK")
</pallas_src>

<mosaic_0001>
module attributes {stable_mosaic.version = 11 : i64} {
  func.func @_sinc_fft_kernel(%arg0: i32, %arg1: memref<32x160xbf16, #tpu.memory_space<vmem>>, %arg2: memref<160x128xbf16, #tpu.memory_space<vmem>>, %arg3: memref<32x128xbf16, #tpu.memory_space<vmem>>) attributes {dimension_semantics = [#tpu.dimension_semantics<parallel>], iteration_bounds = array<i64: 1>, scalar_prefetch = 0 : i64, scratch_operands = 0 : i64, tpu.core_type = #tpu.core_type<tc>, window_params = [{transform_indices = @transform_0, window_bounds = array<i64: 32, 160>}, {pipeline_mode = #tpu.pipeline_mode<synchronous>, transform_indices = @transform_1, window_bounds = array<i64: 160, 128>}, {transform_indices = @transform_2, window_bounds = array<i64: 32, 128>}]} {
    %c0 = arith.constant 0 : index
    %c0_0 = arith.constant 0 : index
    %0 = vector.load %arg1[%c0, %c0_0] : memref<32x160xbf16, #tpu.memory_space<vmem>>, vector<32x160xbf16>
    %c0_1 = arith.constant 0 : index
    %c0_2 = arith.constant 0 : index
    %1 = vector.load %arg2[%c0_1, %c0_2] : memref<160x128xbf16, #tpu.memory_space<vmem>>, vector<160x128xbf16>
    %cst = arith.constant dense<0.000000e+00> : vector<32x128xf32>
    %2 = tpu.matmul %0, %1, %cst {dimension_numbers = #tpu.dot_dimension_numbers<[1], [0], [0], [1], [0, 0, 1, 1], [], []>} : vector<32x160xbf16>, vector<160x128xbf16>, vector<32x128xf32> -> vector<32x128xf32>
    %3 = arith.truncf %2 : vector<32x128xf32> to vector<32x128xbf16>
    %c0_3 = arith.constant 0 : index
    %c0_4 = arith.constant 0 : index
    %4 = vector.load %arg3[%c0_3, %c0_4] : memref<32x128xbf16, #tpu.memory_space<vmem>>, vector<32x128xbf16>
    tpu.vector_store %arg3[%c0_3, %c0_4], %3 {strides = array<i32>} : memref<32x128xbf16, #tpu.memory_space<vmem>>, vector<32x128xbf16>,
    return
  }
  func.func @transform_0(%arg0: i32) -> (i32, i32) {
    %c0_i32 = arith.constant 0 : i32
    %c0_i32_0 = arith.constant 0 : i32
    return %arg0, %c0_i32 : i32, i32
  }
  func.func @transform_1(%arg0: i32) -> (i32, i32) {
    %c0_i32 = arith.constant 0 : i32
    %c0_i32_0 = arith.constant 0 : i32
    %c0_i32_1 = arith.constant 0 : i32
    return %c0_i32, %c0_i32_0 : i32, i32
  }
  func.func @transform_2(%arg0: i32) -> (i32, i32) {
    %c0_i32 = arith.constant 0 : i32
    %c0_i32_0 = arith.constant 0 : i32
    return %arg0, %c0_i32 : i32, i32
  }
}

</mosaic_0001>

<llo_original>
// kernel: sinc_conv_fft.2
$region0: #{sinc_conv_fft.2}
  #allocation0 [shape = 'u32[]', space=smem, size = 0x4, offset = 0x4, fixed_abs, tag = 'smem constant byte address 0x4 - core index']
  #allocation1 [shape = 'u32[144,128]{1,0:T(1,128)}', space=vmem, size = 0x12000, scoped, tag = 'internal scratch']
  #allocation2 [shape = 'u32[2048]{0}', space=vmem, size = 0x2000, scoped, tag = 'scoped memory for sinc_conv_fft.2']
  #allocation3 [shape = 'u32[2048]{0}', space=vmem, size = 0x2000, scoped, tag = 'scoped memory for sinc_conv_fft.2']
  #allocation4 [shape = 'u32[2048]{0}', space=vmem, size = 0x2000, scoped, tag = 'scoped memory for sinc_conv_fft.2']
  #allocation5 [shape = 'u32[2048]{0}', space=vmem, size = 0x2000, scoped, tag = 'scoped memory for sinc_conv_fft.2']
  #allocation6 [shape = 'u32[2048]{0}', space=vmem, size = 0x2000, scoped, tag = 'scoped memory for sinc_conv_fft.2']
  %s0 = inlined_call_operand.vmem [shape: bf16[160,128], index: 0, kind: input, shape index: {}]
  %s1 = inlined_call_operand.vmem [shape: bf16[18,160], index: 1, kind: input, shape index: {}]
  %s2 = inlined_call_operand.<no memory space> [shape: bf16[], index: 2, kind: input, shape index: {}]
  %s3 = inlined_call_operand.vmem [shape: bf16[32,128], index: 3, kind: output, shape index: {}]
  %s4 = sld [smem:[#allocation0]]
  $region18: #{sinc_conv_fft.2} parent=0
    _
  %s6 = ssub.s32 1, %s4
  %s7 = scalar_select 0, %s6, %s4
  %v8 = vstv %s2
  %v9 = vunpack.i.l.bf16 %v8
  %v11 = vunpack.i.h.bf16 %v8
  $region1: #{sinc_conv_fft.2} parent=0
    #allocation7 [shape = 'u8[16384]{0}', space=vmem, size = 0x4000, dematerialized = true, scoped, tag = 'FusionAdapter Buffer %fusion.3 = bf16[32,160]{1,0:T(8,128)(2,1)} fusion(%param_1.12, %param_2.4), kind=kLoop, calls=%fused_computation.5.clone, metadata={op_name="jit(sinc_conv_fft)/jit(_pad)/pad" stack_frame_id=28}']
    // Predicated region
    $region2: #{sinc_conv_fft.2} parent=1 // pred_check
      _
    $region3: #{sinc_conv_fft.2} parent=1 // pred_check_branch
      %14 = sbr.rel (0) target = $region5
    $region4: #{sinc_conv_fft.2} parent=1 // pred_region
      _
    $region5: #{sinc_conv_fft.2} parent=1 // pred_fallthru
      _
    // Predicated region
    $region6: #{sinc_conv_fft.2} parent=1 // pred_check
      _
    $region7: #{sinc_conv_fft.2} parent=1 // pred_check_branch
      %16 = sbr.rel (0) target = $region9
    $region8: #{sinc_conv_fft.2} parent=1 // pred_region
      _
    $region9: #{sinc_conv_fft.2} parent=1 // pred_fallthru
      _
    %v17 = vld [vmem:[%s1] sm:$0xf]
    %v18 = vunpack.c.l.bf16 %v17
    %v19 = vunpack.c.h.bf16 %v17
    %v20 = vlaneseq
    %v21 = vshrl.u32 %v20, 7
    %vm23 = vcmp.lt.s32.totalorder %v21, 18
    %v24 = vsel %vm23, %v18, %v9
    %v25 = vlaneseq
    %v26 = vand.u32 %v25, 127
    %vm28 = vcmp.lt.s32.totalorder %v26, 160
    %v29 = vsel %vm28, %v24, %v9
    %v30 = vpack.c.bf16 0.0, %v29
    %32 = vst [vmem:[#allocation7] sm:$0xf] %v30
    %s33 = scalar_lea.vmem %s1, 4
    %v34 = vld [vmem:[%s33] sm:$0xf]
    %v35 = vunpack.c.l.bf16 %v34
    %v36 = vunpack.c.h.bf16 %v34
    %v37 = vlaneseq
    %v38 = vshrl.u32 %v37, 7
    %vm40 = vcmp.lt.s32.totalorder %v38, 18
    %v41 = vsel %vm40, %v35, %v9
    %v42 = vlaneseq
    %v43 = vand.u32 %v42, 127
    %v44 = vadd.s32 %v43, 128
    %vm45 = vcmp.lt.s32.totalorder %v44, 160
    %v46 = vsel %vm45, %v41, %v9
    %s47 = scalar_lea.vmem [#allocation7], 4
    %v48 = vpack.c.bf16 0.0, %v46
    %50 = vst [vmem:[%s47] sm:$0xf] %v48
    %s51 = scalar_lea.vmem %s1, 8
    %s53 = sor.u32 255, 127
    %s54 = sand.u32 %s53, 85
    %s55 = sshrl.u32 %s54, 1
    %s56 = sor.u32 %s54, %s55
    %s57 = sand.u32 51, %s56
    %s58 = sshrl.u32 %s57, 2
    %s59 = sor.u32 %s57, %s58
    %s60 = sand.u32 15, %s59
    %v61 = vld [vmem:[%s51] sm:%s60]
    %v62 = vunpack.c.l.bf16 %v61
    %v63 = vunpack.c.h.bf16 %v61
    %v64 = vlaneseq
    %v65 = vshrl.u32 %v64, 7
    %v66 = vadd.s32 %v65, 8
    %vm67 = vcmp.lt.s32.totalorder %v66, 18
    %v68 = vsel %vm67, %v62, %v9
    %v69 = vlaneseq
    %v70 = vand.u32 %v69, 127
    %vm72 = vcmp.lt.s32.totalorder %v70, 160
    %v73 = vsel %vm72, %v68, %v9
    %s74 = scalar_lea.vmem [#allocation7], 8
    %v75 = vpack.c.bf16 0.0, %v73
    %77 = vst [vmem:[%s74] sm:$0xf] %v75
    %s78 = scalar_lea.vmem %s1, 12
    %s80 = sor.u32 255, 127
    %s81 = sand.u32 %s80, 85
    %s82 = sshrl.u32 %s81, 1
    %s83 = sor.u32 %s81, %s82
    %s84 = sand.u32 51, %s83
    %s85 = sshrl.u32 %s84, 2
    %s86 = sor.u32 %s84, %s85
    %s87 = sand.u32 15, %s86
    %v88 = vld [vmem:[%s78] sm:%s87]
    %v89 = vunpack.c.l.bf16 %v88
    %v90 = vunpack.c.h.bf16 %v88
    %v91 = vlaneseq
    %v92 = vshrl.u32 %v91, 7
    %v93 = vadd.s32 %v92, 8
    %vm94 = vcmp.lt.s32.totalorder %v93, 18
    %v95 = vsel %vm94, %v89, %v9
    %v96 = vlaneseq
    %v97 = vand.u32 %v96, 127
    %v98 = vadd.s32 %v97, 128
    %vm99 = vcmp.lt.s32.totalorder %v98, 160
    %v100 = vsel %vm99, %v95, %v9
    %s101 = scalar_lea.vmem [#allocation7], 12
    %v102 = vpack.c.bf16 0.0, %v100
    %104 = vst [vmem:[%s101] sm:$0xf] %v102
    %s105 = scalar_lea.vmem %s1, 16
    %s107 = sor.u32 255, 127
    %s108 = sand.u32 %s107, 85
    %s109 = sshrl.u32 %s108, 1
    %s110 = sor.u32 %s108, %s109
    %s111 = sand.u32 51, %s110
    %s112 = sshrl.u32 %s111, 2
    %s113 = sor.u32 %s111, %s112
    %s114 = sand.u32 15, %s113
    %v115 = vld [vmem:[%s105] sm:%s114]
    %v116 = vunpack.c.l.bf16 %v115
    %v117 = vunpack.c.h.bf16 %v115
    %v118 = vlaneseq
    %v119 = vshrl.u32 %v118, 7
    %v120 = vadd.s32 %v119, 16
    %vm121 = vcmp.lt.s32.totalorder %v120, 18
    %v122 = vsel %vm121, %v116, %v9
    %v123 = vlaneseq
    %v124 = vand.u32 %v123, 127
    %vm126 = vcmp.lt.s32.totalorder %v124, 160
    %v127 = vsel %vm126, %v122, %v9
    %s128 = scalar_lea.vmem [#allocation7], 16
    %v129 = vpack.c.bf16 0.0, %v127
    %131 = vst [vmem:[%s128] sm:$0xf] %v129
    %s132 = scalar_lea.vmem %s1, 20
    %s134 = sor.u32 255, 127
    %s135 = sand.u32 %s134, 85
    %s136 = sshrl.u32 %s135, 1
    %s137 = sor.u32 %s135, %s136
    %s138 = sand.u32 51, %s137
    %s139 = sshrl.u32 %s138, 2
    %s140 = sor.u32 %s138, %s139
    %s141 = sand.u32 15, %s140
    %v142 = vld [vmem:[%s132] sm:%s141]
    %v143 = vunpack.c.l.bf16 %v142
    %v144 = vunpack.c.h.bf16 %v142
    %v145 = vlaneseq
    %v146 = vshrl.u32 %v145, 7
    %v147 = vadd.s32 %v146, 16
    %vm148 = vcmp.lt.s32.totalorder %v147, 18
    %v149 = vsel %vm148, %v143, %v9
    %v150 = vlaneseq
    %v151 = vand.u32 %v150, 127
    %v152 = vadd.s32 %v151, 128
    %vm153 = vcmp.lt.s32.totalorder %v152, 160
    %v154 = vsel %vm153, %v149, %v9
    %s155 = scalar_lea.vmem [#allocation7], 20
    %v156 = vpack.c.bf16 0.0, %v154
    %158 = vst [vmem:[%s155] sm:$0xf] %v156
    %s159 = scalar_lea.vmem [#allocation7], 24
    %v160 = vpack.c.bf16 0.0, %v9
    %162 = vst [vmem:[%s159] sm:$0xf] %v160
    %s163 = scalar_lea.vmem [#allocation7], 28
    %v164 = vpack.c.bf16 0.0, %v9
    %166 = vst [vmem:[%s163] sm:$0xf] %v164
    %v168 = vld [vmem:[#allocation7] sm:$0xff]
    %v169 = vld [vmem:[#allocation7 + $0x8] sm:$0xff]
    %v170 = vld [vmem:[#allocation7 + $0x10] sm:$0xff]
    %v171 = vld [vmem:[#allocation7 + $0x18] sm:$0xff]
    %v172 = vld [vmem:[%s0] sm:$0xf]
    %v173 = vld [vmem:[%s0 + $0x4] sm:$0xf]
    %v174 = vld [vmem:[%s0 + $0x8] sm:$0xf]
    %v175 = vld [vmem:[%s0 + $0xc] sm:$0xf]
    %v176 = vld [vmem:[%s0 + $0x10] sm:$0xf]
    %v177 = vld [vmem:[%s0 + $0x14] sm:$0xf]
    %v178 = vld [vmem:[%s0 + $0x18] sm:$0xf]
    %v179 = vld [vmem:[%s0 + $0x1c] sm:$0xf]
    %v180 = vld [vmem:[%s0 + $0x20] sm:$0xf]
    %v181 = vld [vmem:[%s0 + $0x24] sm:$0xf]
    %v182 = vld [vmem:[%s0 + $0x28] sm:$0xf]
    %v183 = vld [vmem:[%s0 + $0x2c] sm:$0xf]
    %v184 = vld [vmem:[%s0 + $0x30] sm:$0xf]
    %v185 = vld [vmem:[%s0 + $0x34] sm:$0xf]
    %v186 = vld [vmem:[%s0 + $0x38] sm:$0xf]
    %v187 = vld [vmem:[%s0 + $0x3c] sm:$0xf]
    %v188 = vld [vmem:[%s0 + $0x40] sm:$0xf]
    %v189 = vld [vmem:[%s0 + $0x44] sm:$0xf]
    %v190 = vld [vmem:[%s0 + $0x48] sm:$0xf]
    %v191 = vld [vmem:[%s0 + $0x4c] sm:$0xf]
    %v196 = vunpack.c.l.b16 %v168
    %v197 = vunpack.c.h.b16 %v168
    %v198 = vunpack.c.l.b16 %v169
    %v199 = vunpack.c.h.b16 %v169
    %v200 = vunpack.c.l.b16 %v170
    %v201 = vunpack.c.h.b16 %v170
    %v202 = vunpack.c.l.b16 %v171
    %v203 = vunpack.c.h.b16 %v171
    %v204 = vpack.c.b16 %v198, %v196
    %v205 = vpack.c.b16 %v199, %v197
    %v206 = vpack.c.b16 %v202, %v200
    %v207 = vpack.c.b16 %v203, %v201
    %v230 = vunpack.c.l.b16 %v172
    %v231 = vunpack.c.l.b16 %v173
    %v232 = vunpack.c.l.b16 %v174
    %v233 = vunpack.c.l.b16 %v175
    %v234 = vunpack.c.l.b16 %v176
    %v235 = vunpack.c.l.b16 %v177
    %v236 = vunpack.c.l.b16 %v178
    %v237 = vunpack.c.l.b16 %v179
    %v238 = vunpack.c.l.b16 %v180
    %v239 = vunpack.c.l.b16 %v181
    %v240 = vunpack.c.l.b16 %v182
    %v241 = vunpack.c.l.b16 %v183
    %v242 = vunpack.c.l.b16 %v184
    %v243 = vunpack.c.l.b16 %v185
    %v244 = vunpack.c.l.b16 %v186
    %v245 = vunpack.c.l.b16 %v187
    %v246 = vunpack.c.l.b16 %v188
    %v247 = vunpack.c.l.b16 %v189
    %v248 = vunpack.c.l.b16 %v190
    %v249 = vunpack.c.l.b16 %v191
    %v250 = vpack.c.b16 %v231, %v230
    %v251 = vpack.c.b16 %v233, %v232
    %v252 = vpack.c.b16 %v235, %v234
    %v253 = vpack.c.b16 %v237, %v236
    %v254 = vpack.c.b16 %v239, %v238
    %v255 = vpack.c.b16 %v241, %v240
    %v256 = vpack.c.b16 %v243, %v242
    %v257 = vpack.c.b16 %v245, %v244
    %v258 = vpack.c.b16 %v247, %v246
    %v259 = vpack.c.b16 %v249, %v248
    %vm270 = vcmask 261120
    %v272 = vsel %vm270, %v205, 0
    %v275 = vsel %vm270, %v207, 0
    %277 = vmatprep.subr.bf16.mxu0 0
    %278 = vmatpush1.bf16.msra.mxu0 %v250
    %279 = vmatprep.subr.bf16.mxu0 0
    %280 = vmatpush1.bf16.msra.mxu0 %v251
    %281 = vmatprep.subr.bf16.mxu0 0
    %282 = vmatpush1.bf16.msra.mxu0 %v252
    %283 = vmatprep.subr.bf16.mxu0 0
    %284 = vmatpush1.bf16.msra.mxu0 %v253
    %285 = vmatprep.subr.bf16.mxu0 0
    %286 = vmatpush1.bf16.msra.mxu0 %v254
    %287 = vmatprep.subr.bf16.mxu0 0
    %288 = vmatpush1.bf16.msra.mxu0 %v255
    %289 = vmatprep.subr.bf16.mxu0 0
    %290 = vmatpush1.bf16.msra.mxu0 %v256
    %291 = vmatprep.subr.bf16.mxu0 0
    %292 = vmatpush1.bf16.msra.mxu0 %v257
    %293 = vmatprep.subr.bf16.mxu0 0
    %294 = vmatpush1.bf16.msra.mxu0 %v258
    %295 = vmatprep.subr.bf16.mxu0 0
    %296 = vmatpush1.bf16.msra.mxu0 %v259
    %297 = vmatprep.subr.bf16.mxu0 0
    %298 = vmatpush1.bf16.msra.mxu0 0
    %299 = vmatprep.subr.bf16.mxu0 0
    %300 = vmatpush1.bf16.msra.mxu0 0
    %301 = vmatprep.subr.bf16.mxu0 0
    %302 = vmatpush1.bf16.msra.mxu0 0
    %303 = vmatprep.subr.bf16.mxu0 0
    %304 = vmatpush1.bf16.msra.mxu0 0
    %305 = vmatprep.subr.bf16.mxu0 0
    %306 = vmatpush1.bf16.msra.mxu0 0
    %307 = vmatprep.subr.bf16.mxu0 0
    %308 = vmatpush1.bf16.msra.mxu0 0
    %309 = vmatprep.mubr.bf16.mxu0 %v272
    %310 = vmatmul.mubr.bf16.gmra.mrb[0].mxu0 %v204
    %v311 = vpop.f32.mrb[0].mxu0
    %v312 = vadd.f32 0.0, %v311
    %v313 = vpop.f32.mrb[0].mxu0
    %v314 = vpop.f32.mrb[0].mxu0
    %v315 = vadd.f32 0.0, %v314
    %v316 = vpop.f32.mrb[0].mxu0
    %317 = vmatprep.mubr.bf16.mxu0 %v275
    %318 = vmatmul.mubr.bf16.gmra.mrb[0].mxu0 %v206
    %v319 = vpop.f32.mrb[0].mxu0
    %v320 = vadd.f32 0.0, %v319
    %v321 = vpop.f32.mrb[0].mxu0
    %v322 = vpop.f32.mrb[0].mxu0
    %v323 = vadd.f32 0.0, %v322
    %v324 = vpop.f32.mrb[0].mxu0
    %325 = vdwg.mxu0
    %v326 = vpack.c.bf16 %v315, %v312
    %v327 = vpack.c.bf16 %v323, %v320
    %v330 = vunpack.c.l.b16 %v326
    %v331 = vunpack.c.h.b16 %v326
    %v332 = vunpack.c.l.b16 %v327
    %v333 = vunpack.c.h.b16 %v327
    %v334 = vpack.c.b16 %v330, %v330
    %v335 = vpack.c.b16 %v331, %v331
    %v336 = vpack.c.b16 %v332, %v332
    %v337 = vpack.c.b16 %v333, %v333
    %342 = vst [vmem:[%s3] sm:$0xf] %v334
    %343 = vst [vmem:[%s3 + $0x4] sm:$0xf] %v335
    %344 = vst [vmem:[%s3 + $0x8] sm:$0xf] %v336
    %345 = vst [vmem:[%s3 + $0xc] sm:$0xf] %v337
    // Predicated region
    $region10: #{sinc_conv_fft.2} parent=1 // pred_check
      _
    $region11: #{sinc_conv_fft.2} parent=1 // pred_check_branch
      %347 = sbr.rel (0) target = $region13
    $region12: #{sinc_conv_fft.2} parent=1 // pred_region
      _
    $region13: #{sinc_conv_fft.2} parent=1 // pred_fallthru
      _
    // Predicated region
    $region14: #{sinc_conv_fft.2} parent=1 // pred_check
      _
    $region15: #{sinc_conv_fft.2} parent=1 // pred_check_branch
      %349 = sbr.rel (0) target = $region17
    $region16: #{sinc_conv_fft.2} parent=1 // pred_region
      _
    $region17: #{sinc_conv_fft.2} parent=1 // pred_fallthru
      _

</llo_original>
